<compile_context>
chip_gen: v5e
topology: v5e:2x2
jax: 0.10.0
libtpu: 0.0.40
codegen_flags: <defaults>
</compile_context>

<pallas_src>
import jax
import jax.numpy as jnp
from jax.experimental import pallas as pl
from jax.experimental.pallas import tpu as pltpu


def _local_disc_kernel(x_ref, w1_ref, b1_ref, w2_ref, b2_ref, w3_ref, b3_ref, o_ref):
    # One kernel step == the whole forward pass, all experts fused.
    x = x_ref[...]                                                   # (B, n_int*D_in)
    h = jnp.dot(x, w1_ref[...], preferred_element_type=jnp.float32)  # (B, n_int*H)
    h = jnp.maximum(h + b1_ref[...], 0.0)
    h = jnp.dot(h, w2_ref[...], preferred_element_type=jnp.float32)  # (B, n_int*H)
    h = jnp.maximum(h + b2_ref[...], 0.0)
    s = jnp.dot(h, w3_ref[...], preferred_element_type=jnp.float32)  # (B, n_int)
    o_ref[...] = s + b3_ref[...]


def pack_params(params):
    """Pack per-expert params into fused block-diagonal matrices (one-time precompute).

    Input layout (stacked across experts):
      w1: (n_int, D_in, H)   b1: (n_int, 1, H)
      w2: (n_int, H,    H)   b2: (n_int, 1, H)
      w3: (n_int, 1,    H)   b3: (n_int, 1, 1)

    Fused layout (flattened y_M feature index is d*n_int + i, i.e. a plain reshape
    of (B, D_in, n_int) -> (B, D_in*n_int), no transpose needed):
      W1f[d*n_int + i, k*H + j] = w1[k, d, j] * (i == k)
      W2f[i*H + j,   k*H + l]   = w2[k, j, l] * (i == k)
      W3f[k*H + j,   i]         = w3[i, 0, j] * (i == k)
    """
    w1, b1, w2, b2, w3, b3 = params
    n_int, d_in, hidden = w1.shape
    eye = jnp.eye(n_int, dtype=w1.dtype)

    w1f = jnp.einsum('ik,kdj->dikj', eye, w1).reshape(n_int * d_in, n_int * hidden)
    w2f = jnp.einsum('ik,kjl->ijkl', eye, w2).reshape(n_int * hidden, n_int * hidden)
    w3f = jnp.einsum('ik,ij->kji', eye, w3[:, 0, :]).reshape(n_int * hidden, n_int)

    b1f = b1[:, 0, :].reshape(1, n_int * hidden)
    b2f = b2[:, 0, :].reshape(1, n_int * hidden)
    b3f = b3[:, 0, 0].reshape(1, n_int)
    return (w1f, b1f, w2f, b2f, w3f, b3f)


def local_discriminator_forward(y_M, fused_params):
    """y_M: (B, D_in, n_int) float32 -> (B, n_int) float32."""
    w1f, b1f, w2f, b2f, w3f, b3f = fused_params
    B, D_in, n_int = y_M.shape

    # Contiguous reshape (free view): feature index = d * n_int + i, matching W1f rows.
    x = y_M.reshape(B, D_in * n_int)

    vmem = pl.BlockSpec(memory_space=pltpu.MemorySpace.VMEM)
    out = pl.pallas_call(
        _local_disc_kernel,
        out_shape=jax.ShapeDtypeStruct((B, n_int), jnp.float32),
        in_specs=[vmem] * 7,
        out_specs=vmem,
    )(x, w1f, b1f, w2f, b2f, w3f, b3f)
    return out   # already (B, n_int), PyTorch layout


def make_params(key, n_int, d_in, hidden=128):
    """Deterministic synthetic parameters (stacked across experts)."""
    ks = jax.random.split(key, 6)
    scale = 0.05
    w1 = scale * jax.random.normal(ks[0], (n_int, d_in, hidden), jnp.float32)
    b1 = scale * jax.random.normal(ks[1], (n_int, 1, hidden), jnp.float32)
    w2 = scale * jax.random.normal(ks[2], (n_int, hidden, hidden), jnp.float32)
    b2 = scale * jax.random.normal(ks[3], (n_int, 1, hidden), jnp.float32)
    w3 = scale * jax.random.normal(ks[4], (n_int, 1, hidden), jnp.float32)
    b3 = scale * jax.random.normal(ks[5], (n_int, 1, 1), jnp.float32)
    return (w1, b1, w2, b2, w3, b3)


def reference_forward(y_M, params):
    """Pure-JAX mirror of the PyTorch forward loop (for correctness check)."""
    w1, b1, w2, b2, w3, b3 = params
    hp = jax.lax.Precision.HIGHEST
    outs = []
    for i in range(y_M.shape[-1]):
        x = y_M[:, :, i]
        h = jax.nn.relu(jnp.dot(x, w1[i], precision=hp) + b1[i, 0])
        h = jax.nn.relu(jnp.dot(h, w2[i], precision=hp) + b2[i, 0])
        s = jnp.dot(h, w3[i, 0][:, None], precision=hp) + b3[i, 0, 0]   # (B, 1)
        outs.append(s)
    return jnp.concatenate(outs, axis=-1)


if __name__ == "__main__":
    # Module hyper-parameters: n_interpretator=4, dim=16 -> D_in = 16 + 16//4 = 20
    n_interpretator = 4
    dim = 16
    d_in = dim + dim // n_interpretator
    batch = 8

    key = jax.random.PRNGKey(0)
    k_x, k_p = jax.random.split(key)
    y_M = jax.random.normal(k_x, (batch, d_in, n_interpretator), jnp.float32)
    params = make_params(k_p, n_interpretator, d_in)
    fused = pack_params(params)   # one-time precompute, outside the hot path

    out = local_discriminator_forward(y_M, fused)
    out = jax.block_until_ready(out)

    ref = reference_forward(y_M, params)
    assert out.shape == (batch, n_interpretator)
    assert jnp.allclose(out, ref, atol=1e-3, rtol=1e-3), "mismatch vs reference"
    print("KERNEL_OK")
</pallas_src>

<mosaic_0001>
module attributes {stable_mosaic.version = 11 : i64} {
  func.func @_local_disc_kernel(%arg0: memref<8x80xf32, #tpu.memory_space<vmem>>, %arg1: memref<80x512xf32, #tpu.memory_space<vmem>>, %arg2: memref<1x512xf32, #tpu.memory_space<vmem>>, %arg3: memref<512x512xf32, #tpu.memory_space<vmem>>, %arg4: memref<1x512xf32, #tpu.memory_space<vmem>>, %arg5: memref<512x4xf32, #tpu.memory_space<vmem>>, %arg6: memref<1x4xf32, #tpu.memory_space<vmem>>, %arg7: memref<8x4xf32, #tpu.memory_space<vmem>>) attributes {dimension_semantics = [], scalar_prefetch = 0 : i64, scratch_operands = 0 : i64, tpu.core_type = #tpu.core_type<tc>} {
    %c0 = arith.constant 0 : index
    %c0_0 = arith.constant 0 : index
    %0 = vector.load %arg0[%c0, %c0_0] : memref<8x80xf32, #tpu.memory_space<vmem>>, vector<8x80xf32>
    %c0_1 = arith.constant 0 : index
    %c0_2 = arith.constant 0 : index
    %1 = vector.load %arg1[%c0_1, %c0_2] : memref<80x512xf32, #tpu.memory_space<vmem>>, vector<80x512xf32>
    %cst = arith.constant dense<0.000000e+00> : vector<8x512xf32>
    %2 = tpu.matmul %0, %1, %cst {dimension_numbers = #tpu.dot_dimension_numbers<[1], [0], [0], [1], [0, 0, 1, 1], [], []>} : vector<8x80xf32>, vector<80x512xf32>, vector<8x512xf32> -> vector<8x512xf32>
    %c0_3 = arith.constant 0 : index
    %c0_4 = arith.constant 0 : index
    %3 = vector.load %arg2[%c0_3, %c0_4] : memref<1x512xf32, #tpu.memory_space<vmem>>, vector<1x512xf32>
    %4 = vector.broadcast %3 : vector<1x512xf32> to vector<8x512xf32>
    %5 = arith.addf %2, %4 : vector<8x512xf32>
    %cst_5 = arith.constant 0.000000e+00 : f32
    %6 = vector.broadcast %cst_5 : f32 to vector<8x512xf32>
    %7 = arith.maximumf %5, %6 : vector<8x512xf32>
    %c0_6 = arith.constant 0 : index
    %c0_7 = arith.constant 0 : index
    %8 = vector.load %arg3[%c0_6, %c0_7] : memref<512x512xf32, #tpu.memory_space<vmem>>, vector<512x512xf32>
    %cst_8 = arith.constant dense<0.000000e+00> : vector<8x512xf32>
    %9 = tpu.matmul %7, %8, %cst_8 {dimension_numbers = #tpu.dot_dimension_numbers<[1], [0], [0], [1], [0, 0, 1, 1], [], []>} : vector<8x512xf32>, vector<512x512xf32>, vector<8x512xf32> -> vector<8x512xf32>
    %c0_9 = arith.constant 0 : index
    %c0_10 = arith.constant 0 : index
    %10 = vector.load %arg4[%c0_9, %c0_10] : memref<1x512xf32, #tpu.memory_space<vmem>>, vector<1x512xf32>
    %11 = vector.broadcast %10 : vector<1x512xf32> to vector<8x512xf32>
    %12 = arith.addf %9, %11 : vector<8x512xf32>
    %cst_11 = arith.constant 0.000000e+00 : f32
    %13 = vector.broadcast %cst_11 : f32 to vector<8x512xf32>
    %14 = arith.maximumf %12, %13 : vector<8x512xf32>
    %c0_12 = arith.constant 0 : index
    %c0_13 = arith.constant 0 : index
    %15 = vector.load %arg5[%c0_12, %c0_13] : memref<512x4xf32, #tpu.memory_space<vmem>>, vector<512x4xf32>
    %cst_14 = arith.constant dense<0.000000e+00> : vector<8x4xf32>
    %16 = tpu.matmul %14, %15, %cst_14 {dimension_numbers = #tpu.dot_dimension_numbers<[1], [0], [0], [1], [0, 0, 1, 1], [], []>} : vector<8x512xf32>, vector<512x4xf32>, vector<8x4xf32> -> vector<8x4xf32>
    %c0_15 = arith.constant 0 : index
    %c0_16 = arith.constant 0 : index
    %17 = vector.load %arg6[%c0_15, %c0_16] : memref<1x4xf32, #tpu.memory_space<vmem>>, vector<1x4xf32>
    %18 = vector.broadcast %17 : vector<1x4xf32> to vector<8x4xf32>
    %19 = arith.addf %16, %18 : vector<8x4xf32>
    %c0_17 = arith.constant 0 : index
    %c0_18 = arith.constant 0 : index
    %20 = vector.load %arg7[%c0_17, %c0_18] : memref<8x4xf32, #tpu.memory_space<vmem>>, vector<8x4xf32>
    tpu.vector_store %arg7[%c0_17, %c0_18], %19 {strides = array<i32>} : memref<8x4xf32, #tpu.memory_space<vmem>>, vector<8x4xf32>,
    return
  }
}

</mosaic_0001>

<llo_original>
// kernel: tpu_custom_call.1
$region0: #{tpu_custom_call.1}
  #allocation0 [shape = 'u32[]', space=smem, size = 0x4, offset = 0x4, fixed_abs, tag = 'smem constant byte address 0x4 - core index']
  #allocation1 [shape = 'u32[72,128]{1,0:T(1,128)}', space=vmem, size = 0x9000, scoped, tag = 'internal scratch']
  %s0 = inlined_call_operand.vmem [shape: f32[8,80], index: 0, kind: input, shape index: {}]
  %s1 = inlined_call_operand.vmem [shape: f32[80,512], index: 1, kind: input, shape index: {}]
  %s2 = inlined_call_operand.vmem [shape: f32[1,512], index: 2, kind: input, shape index: {}]
  %s3 = inlined_call_operand.hbm [shape: f32[512,512], index: 3, kind: input, shape index: {}]
  %s4 = inlined_call_operand.vmem [shape: f32[1,512], index: 4, kind: input, shape index: {}]
  %s5 = inlined_call_operand.vmem [shape: f32[512,4], index: 5, kind: input, shape index: {}]
  %s6 = inlined_call_operand.vmem [shape: f32[1,4], index: 6, kind: input, shape index: {}]
  %s7 = inlined_call_operand.vmem [shape: f32[8,4], index: 7, kind: output, shape index: {}]
  %s8 = sld [smem:[#allocation0]]
  $region42: #{tpu_custom_call.1} parent=0
    _
  %s10 = ssub.s32 1, %s8
  %s11 = scalar_select 0, %s10, %s8
  $region1: #{tpu_custom_call.1} parent=0
    #allocation2 [shape = 'u8[1048576]{0}', space=vmem, size = 0x100000, scoped, tag = 'input window, operand 3, single buffered']
    #allocation3 [shape = 's32[1]{0}', space=sflag, size = 0x4, scoped, tag = 'scoped memory for tpu_custom_call.1']
    %12 = vsyncpa [#allocation3], 0
    // Predicated region
    $region2: #{tpu_custom_call.1} parent=1 // pred_check
      _
    $region3: #{tpu_custom_call.1} parent=1 // pred_check_branch
      %14 = sbr.rel (0) target = $region5
    $region4: #{tpu_custom_call.1} parent=1 // pred_region
      _
    $region5: #{tpu_custom_call.1} parent=1 // pred_fallthru
      _
    // Predicated region
    $region6: #{tpu_custom_call.1} parent=1 // pred_check
      _
    $region7: #{tpu_custom_call.1} parent=1 // pred_check_branch
      %16 = sbr.rel (0) target = $region9
    $region8: #{tpu_custom_call.1} parent=1 // pred_region
      _
    $region9: #{tpu_custom_call.1} parent=1 // pred_fallthru
      _
    // Predicated region
    $region10: #{tpu_custom_call.1} parent=1 // pred_check
      _
    $region11: #{tpu_custom_call.1} parent=1 // pred_check_branch
      %18 = sbr.rel (0) target = $region13
    $region12: #{tpu_custom_call.1} parent=1 // pred_region
      _
    $region13: #{tpu_custom_call.1} parent=1 // pred_fallthru
      _
    // Predicated region
    $region14: #{tpu_custom_call.1} parent=1 // pred_check
      _
    $region15: #{tpu_custom_call.1} parent=1 // pred_check_branch
      %20 = sbr.rel (0) target = $region17
    $region16: #{tpu_custom_call.1} parent=1 // pred_region
      %22 = vsyncadd [#allocation3], 0
      %s23 = sshll.u32 %s3, 4
      %s24 = int_to_ptr.hbm [resolvable:$true] %s23
      %s25 = sshll.u32 [#allocation2], 4
      %s26 = int_to_ptr.vmem [resolvable:$true] %s25
      %31 = dma.hbm_to_vmem [thread:$0]  %s24, 32768, %s26, [#allocation3], 512, 512, 32
    $region17: #{tpu_custom_call.1} parent=1 // pred_fallthru
      _
    // Predicated region
    $region18: #{tpu_custom_call.1} parent=1 // pred_check
      _
    $region19: #{tpu_custom_call.1} parent=1 // pred_check_branch
      %33 = sbr.rel (0) target = $region21
    $region20: #{tpu_custom_call.1} parent=1 // pred_region
      _
    $region21: #{tpu_custom_call.1} parent=1 // pred_fallthru
      _
    // Predicated region
    $region22: #{tpu_custom_call.1} parent=1 // pred_check
      _
    $region23: #{tpu_custom_call.1} parent=1 // pred_check_branch
      %35 = sbr.rel (0) target = $region25
    $region24: #{tpu_custom_call.1} parent=1 // pred_region
      _
    $region25: #{tpu_custom_call.1} parent=1 // pred_fallthru
      _
    // Predicated region
    $region26: #{tpu_custom_call.1} parent=1 // pred_check
      _
    $region27: #{tpu_custom_call.1} parent=1 // pred_check_branch
      %37 = sbr.rel (0) target = $region29
    $region28: #{tpu_custom_call.1} parent=1 // pred_region
      _
    $region29: #{tpu_custom_call.1} parent=1 // pred_fallthru
      _
    // Predicated region
    $region30: #{tpu_custom_call.1} parent=1 // pred_check
      _
    $region31: #{tpu_custom_call.1} parent=1 // pred_check_branch
      %39 = sbr.rel (0) target = $region33
    $region32: #{tpu_custom_call.1} parent=1 // pred_region
      %41 = dma.done [#allocation3], 32768
    $region33: #{tpu_custom_call.1} parent=1 // pred_fallthru
      _
    %v42 = vld [vmem:[%s0] sm:$0xff]
    %v43 = vld [vmem:[%s1] sm:$0xff]
    %v44 = vld [vmem:[%s1 + $0x8] sm:$0xff]
    %v45 = vld [vmem:[%s1 + $0x10] sm:$0xff]
    %v46 = vld [vmem:[%s1 + $0x18] sm:$0xff]
    %v47 = vld [vmem:[%s1 + $0x20] sm:$0xff]
    %v48 = vld [vmem:[%s1 + $0x28] sm:$0xff]
    %v49 = vld [vmem:[%s1 + $0x30] sm:$0xff]
    %v50 = vld [vmem:[%s1 + $0x38] sm:$0xff]
    %v51 = vld [vmem:[%s1 + $0x40] sm:$0xff]
    %v52 = vld [vmem:[%s1 + $0x48] sm:$0xff]
    %v53 = vld [vmem:[%s1 + $0x50] sm:$0xff]
    %v54 = vld [vmem:[%s1 + $0x58] sm:$0xff]
    %v55 = vld [vmem:[%s1 + $0x60] sm:$0xff]
    %v56 = vld [vmem:[%s1 + $0x68] sm:$0xff]
    %v57 = vld [vmem:[%s1 + $0x70] sm:$0xff]
    %v58 = vld [vmem:[%s1 + $0x78] sm:$0xff]
    %v59 = vld [vmem:[%s1 + $0x80] sm:$0xff]
    %v60 = vld [vmem:[%s1 + $0x88] sm:$0xff]
    %v61 = vld [vmem:[%s1 + $0x90] sm:$0xff]
    %v62 = vld [vmem:[%s1 + $0x98] sm:$0xff]
    %v63 = vld [vmem:[%s1 + $0xa0] sm:$0xff]
    %v64 = vld [vmem:[%s1 + $0xa8] sm:$0xff]
    %v65 = vld [vmem:[%s1 + $0xb0] sm:$0xff]
    %v66 = vld [vmem:[%s1 + $0xb8] sm:$0xff]
    %v67 = vld [vmem:[%s1 + $0xc0] sm:$0xff]
    %v68 = vld [vmem:[%s1 + $0xc8] sm:$0xff]
    %v69 = vld [vmem:[%s1 + $0xd0] sm:$0xff]
    %v70 = vld [vmem:[%s1 + $0xd8] sm:$0xff]
    %v71 = vld [vmem:[%s1 + $0xe0] sm:$0xff]
    %v72 = vld [vmem:[%s1 + $0xe8] sm:$0xff]
    %v73 = vld [vmem:[%s1 + $0xf0] sm:$0xff]
    %v74 = vld [vmem:[%s1 + $0xf8] sm:$0xff]
    %v75 = vld [vmem:[%s1 + $0x100] sm:$0xff]
    %v76 = vld [vmem:[%s1 + $0x108] sm:$0xff]
    %v77 = vld [vmem:[%s1 + $0x110] sm:$0xff]
    %v78 = vld [vmem:[%s1 + $0x118] sm:$0xff]
    %v79 = vld [vmem:[%s1 + $0x120] sm:$0xff]
    %v80 = vld [vmem:[%s1 + $0x128] sm:$0xff]
    %v81 = vld [vmem:[%s1 + $0x130] sm:$0xff]
    %v82 = vld [vmem:[%s1 + $0x138] sm:$0xff]
    %v83 = vld [vmem:[%s2] sm:$0xf]
    %v85 = vperm.slane %v83, 0
    %v86 = vperm.slane %v83, 1
    %v87 = vperm.slane %v83, 2
    %v88 = vperm.slane %v83, 3
    %vm93 = vcmask 654336
    %v95 = vsel %vm93, %v42, 0
    %97 = vmatpush.msra.mxu0 0.0
    %98 = vmatpush.msra.mxu0 0.0
    %99 = vmatpush.msra.mxu0 0.0
    %100 = vmatpush.msra.mxu0 0.0
    %101 = vmatpush.msra.mxu0 0.0
    %102 = vmatpush.msra.mxu0 0.0
    %103 = vmatpush.msra.mxu0 %v79
    %104 = vmatpush.msra.mxu0 %v75
    %105 = vmatpush.msra.mxu0 %v71
    %106 = vmatpush.msra.mxu0 %v67
    %107 = vmatpush.msra.mxu0 %v63
    %108 = vmatpush.msra.mxu0 %v59
    %109 = vmatpush.msra.mxu0 %v55
    %110 = vmatpush.msra.mxu0 %v51
    %111 = vmatpush.msra.mxu0 %v47
    %112 = vmatpush.msra.mxu0 %v43
    %113 = vmatmul.f32.gmra.mxu0 %v95
    %v114 = vpop.f32.mrf.mxu0
    %v115 = vadd.f32 %v85, %v114
    %116 = vdwg.mxu0
    %117 = vmatpush.msra.mxu0 0.0
    %118 = vmatpush.msra.mxu0 0.0
    %119 = vmatpush.msra.mxu0 0.0
    %120 = vmatpush.msra.mxu0 0.0
    %121 = vmatpush.msra.mxu0 0.0
    %122 = vmatpush.msra.mxu0 0.0
    %123 = vmatpush.msra.mxu0 %v80
    %124 = vmatpush.msra.mxu0 %v76
    %125 = vmatpush.msra.mxu0 %v72
    %126 = vmatpush.msra.mxu0 %v68
    %127 = vmatpush.msra.mxu0 %v64
    %128 = vmatpush.msra.mxu0 %v60
    %129 = vmatpush.msra.mxu0 %v56
    %130 = vmatpush.msra.mxu0 %v52
    %131 = vmatpush.msra.mxu0 %v48
    %132 = vmatpush.msra.mxu0 %v44
    %133 = vmatmul.f32.gmra.mxu0 %v95
    %v134 = vpop.f32.mrf.mxu0
    %v135 = vadd.f32 %v86, %v134
    %136 = vdwg.mxu0
    %137 = vmatpush.msra.mxu0 0.0
    %138 = vmatpush.msra.mxu0 0.0
    %139 = vmatpush.msra.mxu0 0.0
    %140 = vmatpush.msra.mxu0 0.0
    %141 = vmatpush.msra.mxu0 0.0
    %142 = vmatpush.msra.mxu0 0.0
    %143 = vmatpush.msra.mxu0 %v81
    %144 = vmatpush.msra.mxu0 %v77
    %145 = vmatpush.msra.mxu0 %v73
    %146 = vmatpush.msra.mxu0 %v69
    %147 = vmatpush.msra.mxu0 %v65
    %148 = vmatpush.msra.mxu0 %v61
    %149 = vmatpush.msra.mxu0 %v57
    %150 = vmatpush.msra.mxu0 %v53
    %151 = vmatpush.msra.mxu0 %v49
    %152 = vmatpush.msra.mxu0 %v45
    %153 = vmatmul.f32.gmra.mxu0 %v95
    %v154 = vpop.f32.mrf.mxu0
    %v155 = vadd.f32 %v87, %v154
    %156 = vdwg.mxu0
    %157 = vmatpush.msra.mxu0 0.0
    %158 = vmatpush.msra.mxu0 0.0
    %159 = vmatpush.msra.mxu0 0.0
    %160 = vmatpush.msra.mxu0 0.0
    %161 = vmatpush.msra.mxu0 0.0
    %162 = vmatpush.msra.mxu0 0.0
    %163 = vmatpush.msra.mxu0 %v82
    %164 = vmatpush.msra.mxu0 %v78
    %165 = vmatpush.msra.mxu0 %v74
    %166 = vmatpush.msra.mxu0 %v70
    %167 = vmatpush.msra.mxu0 %v66
    %168 = vmatpush.msra.mxu0 %v62
    %169 = vmatpush.msra.mxu0 %v58
    %170 = vmatpush.msra.mxu0 %v54
    %171 = vmatpush.msra.mxu0 %v50
    %172 = vmatpush.msra.mxu0 %v46
    %173 = vmatmul.f32.gmra.mxu0 %v95
    %v174 = vpop.f32.mrf.mxu0
    %v175 = vadd.f32 %v88, %v174
    %176 = vdwg.mxu0
    %v177 = vmax.f32 %v115, 0.0
    %v178 = vmax.f32 %v135, 0.0
    %v179 = vmax.f32 %v155, 0.0
    %v180 = vmax.f32 %v175, 0.0
    %v181 = vld [vmem:[#allocation2] sm:$0xff]
    %v182 = vld [vmem:[#allocation2 + $0x8] sm:$0xff]
    %v183 = vld [vmem:[#allocation2 + $0x10] sm:$0xff]
    %v184 = vld [vmem:[#allocation2 + $0x18] sm:$0xff]
    %v185 = vld [vmem:[#allocation2 + $0x20] sm:$0xff]
    %v186 = vld [vmem:[#allocation2 + $0x28] sm:$0xff]
    %v187 = vld [vmem:[#allocation2 + $0x30] sm:$0xff]
    %v188 = vld [vmem:[#allocation2 + $0x38] sm:$0xff]
    %v189 = vld [vmem:[#allocation2 + $0x40] sm:$0xff]
    %v190 = vld [vmem:[#allocation2 + $0x48] sm:$0xff]
    %v191 = vld [vmem:[#allocation2 + $0x50] sm:$0xff]
    %v192 = vld [vmem:[#allocation2 + $0x58] sm:$0xff]
    %v193 = vld [vmem:[#allocation2 + $0x60] sm:$0xff]
    %v194 = vld [vmem:[#allocation2 + $0x68] sm:$0xff]
    %v195 = vld [vmem:[#allocation2 + $0x70] sm:$0xff]
    %v196 = vld [vmem:[#allocation2 + $0x78] sm:$0xff]
    %v197 = vld [vmem:[#allocation2 + $0x80] sm:$0xff]
    %v198 = vld [vmem:[#allocation2 + $0x88] sm:$0xff]
    %v199 = vld [vmem:[#allocation2 + $0x90] sm:$0xff]
    %v200 = vld [vmem:[#allocation2 + $0x98] sm:$0xff]
    %v201 = vld [vmem:[#allocation2 + $0xa0] sm:$0xff]
    %v202 = vld [vmem:[#allocation2 + $0xa8] sm:$0xff]
    %v203 = vld [vmem:[#allocation2 + $0xb0] sm:$0xff]
    %v204 = vld [vmem:[#allocation2 + $0xb8] sm:$0xff]
    %v205 = vld [vmem:[#allocation2 + $0xc0] sm:$0xff]
    %v206 = vld [vmem:[#allocation2 + $0xc8] sm:$0xff]
    %v207 = vld [vmem:[#allocation2 + $0xd0] sm:$0xff]
    %v208 = vld [vmem:[#allocation2 + $0xd8] sm:$0xff]
    %v209 = vld [vmem:[#allocation2 + $0xe0] sm:$0xff]
    %v210 = vld [vmem:[#allocation2 + $0xe8] sm:$0xff]
    %v211 = vld [vmem:[#allocation2 + $0xf0] sm:$0xff]
    %v212 = vld [vmem:[#allocation2 + $0xf8] sm:$0xff]
    %v213 = vld [vmem:[#allocation2 + $0x100] sm:$0xff]
    %v214 = vld [vmem:[#allocation2 + $0x108] sm:$0xff]
    %v215 = vld [vmem:[#allocation2 + $0x110] sm:$0xff]
    %v216 = vld [vmem:[#allocation2 + $0x118] sm:$0xff]
    %v217 = vld [vmem:[#allocation2 + $0x120] sm:$0xff]
    %v218 = vld [vmem:[#allocation2 + $0x128] sm:$0xff]
    %v219 = vld [vmem:[#allocation2 + $0x130] sm:$0xff]
    %v220 = vld [vmem:[#allocation2 + $0x138] sm:$0xff]
    %v221 = vld [vmem:[#allocation2 + $0x140] sm:$0xff]
    %v222 = vld [vmem:[#allocation2 + $0x148] sm:$0xff]
    %v223 = vld [vmem:[#allocation2 + $0x150] sm:$0xff]
    %v224 = vld [vmem:[#allocation2 + $0x158] sm:$0xff]
    %v225 = vld [vmem:[#allocation2 + $0x160] sm:$0xff]
    %v226 = vld [vmem:[#allocation2 + $0x168] sm:$0xff]
    %v227 = vld [vmem:[#allocation2 + $0x170] sm:$0xff]
    %v228 = vld [vmem:[#allocation2 + $0x178] sm:$0xff]
    %v229 = vld [vmem:[#allocation2 + $0x180] sm:$0xff]
    %v230 = vld [vmem:[#allocation2 + $0x188] sm:$0xff]
    %v231 = vld [vmem:[#allocation2 + $0x190] sm:$0xff]
    %v232 = vld [vmem:[#allocation2 + $0x198] sm:$0xff]
    %v233 = vld [vmem:[#allocation2 + $0x1a0] sm:$0xff]
    %v234 = vld [vmem:[#allocation2 + $0x1a8] sm:$0xff]
    %v235 = vld [vmem:[#allocation2 + $0x1b0] sm:$0xff]
    %v236 = vld [vmem:[#allocation2 + $0x1b8] sm:$0xff]
    %v237 = vld [vmem:[#allocation2 + $0x1c0] sm:$0xff]
    %v238 = vld [vmem:[#allocation2 + $0x1c8] sm:$0xff]
    %v239 = vld [vmem:[#allocation2 + $0x1d0] sm:$0xff]
    %v240 = vld [vmem:[#allocation2 + $0x1d8] sm:$0xff]
    %v241 = vld [vmem:[#allocation2 + $0x1e0] sm:$0xff]
    %v242 = vld [vmem:[#allocation2 + $0x1e8] sm:$0xff]
    %v243 = vld [vmem:[#allocation2 + $0x1f0] sm:$0xff]
    %v244 = vld [vmem:[#allocation2 + $0x1f8] sm:$0xff]
    %v245 = vld [vmem:[#allocation2 + $0x200] sm:$0xff]
    %v246 = vld [vmem:[#allocation2 + $0x208] sm:$0xff]
    %v247 = vld [vmem:[#allocation2 + $0x210] sm:$0xff]
    %v248 = vld [vmem:[#allocation2 + $0x218] sm:$0xff]
    %v249 = vld [vmem:[#allocation2 + $0x220] sm:$0xff]
    %v250 = vld [vmem:[#allocation2 + $0x228] sm:$0xff]
    %v251 = vld [vmem:[#allocation2 + $0x230] sm:$0xff]
    %v252 = vld [vmem:[#allocation2 + $0x238] sm:$0xff]
    %v253 = vld [vmem:[#allocation2 + $0x240] sm:$0xff]
    %v254 = vld [vmem:[#allocation2 + $0x248] sm:$0xff]
    %v255 = vld [vmem:[#allocation2 + $0x250] sm:$0xff]
    %v256 = vld [vmem:[#allocation2 + $0x258] sm:$0xff]
    %v257 = vld [vmem:[#allocation2 + $0x260] sm:$0xff]
    %v258 = vld [vmem:[#allocation2 + $0x268] sm:$0xff]
    %v259 = vld [vmem:[#allocation2 + $0x270] sm:$0xff]
    %v260 = vld [vmem:[#allocation2 + $0x278] sm:$0xff]
    %v261 = vld [vmem:[#allocation2 + $0x280] sm:$0xff]
    %v262 = vld [vmem:[#allocation2 + $0x288] sm:$0xff]
    %v263 = vld [vmem:[#allocation2 + $0x290] sm:$0xff]
    %v264 = vld [vmem:[#allocation2 + $0x298] sm:$0xff]
    %v265 = vld [vmem:[#allocation2 + $0x2a0] sm:$0xff]
    %v266 = vld [vmem:[#allocation2 + $0x2a8] sm:$0xff]
    %v267 = vld [vmem:[#allocation2 + $0x2b0] sm:$0xff]
    %v268 = vld [vmem:[#allocation2 + $0x2b8] sm:$0xff]
    %v269 = vld [vmem:[#allocation2 + $0x2c0] sm:$0xff]
    %v270 = vld [vmem:[#allocation2 + $0x2c8] sm:$0xff]
    %v271 = vld [vmem:[#allocation2 + $0x2d0] sm:$0xff]
    %v272 = vld [vmem:[#allocation2 + $0x2d8] sm:$0xff]
    %v273 = vld [vmem:[#allocation2 + $0x2e0] sm:$0xff]
    %v274 = vld [vmem:[#allocation2 + $0x2e8] sm:$0xff]
    %v275 = vld [vmem:[#allocation2 + $0x2f0] sm:$0xff]
    %v276 = vld [vmem:[#allocation2 + $0x2f8] sm:$0xff]
    %v277 = vld [vmem:[#allocation2 + $0x300] sm:$0xff]
    %v278 = vld [vmem:[#allocation2 + $0x308] sm:$0xff]
    %v279 = vld [vmem:[#allocation2 + $0x310] sm:$0xff]
    %v280 = vld [vmem:[#allocation2 + $0x318] sm:$0xff]
    %v281 = vld [vmem:[#allocation2 + $0x320] sm:$0xff]
    %v282 = vld [vmem:[#allocation2 + $0x328] sm:$0xff]
    %v283 = vld [vmem:[#allocation2 + $0x330] sm:$0xff]
    %v284 = vld [vmem:[#allocation2 + $0x338] sm:$0xff]
    %v285 = vld [vmem:[#allocation2 + $0x340] sm:$0xff]
    %v286 = vld [vmem:[#allocation2 + $0x348] sm:$0xff]
    %v287 = vld [vmem:[#allocation2 + $0x350] sm:$0xff]
    %v288 = vld [vmem:[#allocation2 + $0x358] sm:$0xff]
    %v289 = vld [vmem:[#allocation2 + $0x360] sm:$0xff]
    %v290 = vld [vmem:[#allocation2 + $0x368] sm:$0xff]
    %v291 = vld [vmem:[#allocation2 + $0x370] sm:$0xff]
    %v292 = vld [vmem:[#allocation2 + $0x378] sm:$0xff]
    %v293 = vld [vmem:[#allocation2 + $0x380] sm:$0xff]
    %v294 = vld [vmem:[#allocation2 + $0x388] sm:$0xff]
    %v295 = vld [vmem:[#allocation2 + $0x390] sm:$0xff]
    %v296 = vld [vmem:[#allocation2 + $0x398] sm:$0xff]
    %v297 = vld [vmem:[#allocation2 + $0x3a0] sm:$0xff]
    %v298 = vld [vmem:[#allocation2 + $0x3a8] sm:$0xff]
    %v299 = vld [vmem:[#allocation2 + $0x3b0] sm:$0xff]
    %v300 = vld [vmem:[#allocation2 + $0x3b8] sm:$0xff]
    %v301 = vld [vmem:[#allocation2 + $0x3c0] sm:$0xff]
    %v302 = vld [vmem:[#allocation2 + $0x3c8] sm:$0xff]
    %v303 = vld [vmem:[#allocation2 + $0x3d0] sm:$0xff]
    %v304 = vld [vmem:[#allocation2 + $0x3d8] sm:$0xff]
    %v305 = vld [vmem:[#allocation2 + $0x3e0] sm:$0xff]
    %v306 = vld [vmem:[#allocation2 + $0x3e8] sm:$0xff]
    %v307 = vld [vmem:[#allocation2 + $0x3f0] sm:$0xff]
    %v308 = vld [vmem:[#allocation2 + $0x3f8] sm:$0xff]
    %v309 = vld [vmem:[#allocation2 + $0x400] sm:$0xff]
    %v310 = vld [vmem:[#allocation2 + $0x408] sm:$0xff]
    %v311 = vld [vmem:[#allocation2 + $0x410] sm:$0xff]
    %v312 = vld [vmem:[#allocation2 + $0x418] sm:$0xff]
    %v313 = vld [vmem:[#allocation2 + $0x420] sm:$0xff]
    %v314 = vld [vmem:[#allocation2 + $0x428] sm:$0xff]
    %v315 = vld [vmem:[#allocation2 + $0x430] sm:$0xff]
    %v316 = vld [vmem:[#allocation2 + $0x438] sm:$0xff]
    %v317 = vld [vmem:[#allocation2 + $0x440] sm:$0xff]
    %v318 = vld [vmem:[#allocation2 + $0x448] sm:$0xff]
    %v319 = vld [vmem:[#allocation2 + $0x450] sm:$0xff]
    %v320 = vld [vmem:[#allocation2 + $0x458] sm:$0xff]
    %v321 = vld [vmem:[#allocation2 + $0x460] sm:$0xff]
    %v322 = vld [vmem:[#allocation2 + $0x468] sm:$0xff]
    %v323 = vld [vmem:[#allocation2 + $0x470] sm:$0xff]
    %v324 = vld [vmem:[#allocation2 + $0x478] sm:$0xff]
    %v325 = vld [vmem:[#allocation2 + $0x480] sm:$0xff]
    %v326 = vld [vmem:[#allocation2 + $0x488] sm:$0xff]
    %v327 = vld [vmem:[#allocation2 + $0x490] sm:$0xff]
    %v328 = vld [vmem:[#allocation2 + $0x498] sm:$0xff]
    %v329 = vld [vmem:[#allocation2 + $0x4a0] sm:$0xff]
    %v330 = vld [vmem:[#allocation2 + $0x4a8] sm:$0xff]
    %v331 = vld [vmem:[#allocation2 + $0x4b0] sm:$0xff]
    %v332 = vld [vmem:[#allocation2 + $0x4b8] sm:$0xff]
    %v333 = vld [vmem:[#allocation2 + $0x4c0] sm:$0xff]
    %v334 = vld [vmem:[#allocation2 + $0x4c8] sm:$0xff]
    %v335 = vld [vmem:[#allocation2 + $0x4d0] sm:$0xff]
    %v336 = vld [vmem:[#allocation2 + $0x4d8] sm:$0xff]
    %v337 = vld [vmem:[#allocation2 + $0x4e0] sm:$0xff]
    %v338 = vld [vmem:[#allocation2 + $0x4e8] sm:$0xff]
    %v339 = vld [vmem:[#allocation2 + $0x4f0] sm:$0xff]
    %v340 = vld [vmem:[#allocation2 + $0x4f8] sm:$0xff]
    %v341 = vld [vmem:[#allocation2 + $0x500] sm:$0xff]
    %v342 = vld [vmem:[#allocation2 + $0x508] sm:$0xff]
    %v343 = vld [vmem:[#allocation2 + $0x510] sm:$0xff]
    %v344 = vld [vmem:[#allocation2 + $0x518] sm:$0xff]
    %v345 = vld [vmem:[#allocation2 + $0x520] sm:$0xff]
    %v346 = vld [vmem:[#allocation2 + $0x528] sm:$0xff]
    %v347 = vld [vmem:[#allocation2 + $0x530] sm:$0xff]
    %v348 = vld [vmem:[#allocation2 + $0x538] sm:$0xff]
    %v349 = vld [vmem:[#allocation2 + $0x540] sm:$0xff]
    %v350 = vld [vmem:[#allocation2 + $0x548] sm:$0xff]
    %v351 = vld [vmem:[#allocation2 + $0x550] sm:$0xff]
    %v352 = vld [vmem:[#allocation2 + $0x558] sm:$0xff]
    %v353 = vld [vmem:[#allocation2 + $0x560] sm:$0xff]
    %v354 = vld [vmem:[#allocation2 + $0x568] sm:$0xff]
    %v355 = vld [vmem:[#allocation2 + $0x570] sm:$0xff]
    %v356 = vld [vmem:[#allocation2 + $0x578] sm:$0xff]
    %v357 = vld [vmem:[#allocation2 + $0x580] sm:$0xff]
    %v358 = vld [vmem:[#allocation2 + $0x588] sm:$0xff]
    %v359 = vld [vmem:[#allocation2 + $0x590] sm:$0xff]
    %v360 = vld [vmem:[#allocation2 + $0x598] sm:$0xff]
    %v361 = vld [vmem:[#allocation2 + $0x5a0] sm:$0xff]
    %v362 = vld [vmem:[#allocation2 + $0x5a8] sm:$0xff]
    %v363 = vld [vmem:[#allocation2 + $0x5b0] sm:$0xff]
    %v364 = vld [vmem:[#allocation2 + $0x5b8] sm:$0xff]
    %v365 = vld [vmem:[#allocation2 + $0x5c0] sm:$0xff]
    %v366 = vld [vmem:[#allocation2 + $0x5c8] sm:$0xff]
    %v367 = vld [vmem:[#allocation2 + $0x5d0] sm:$0xff]
    %v368 = vld [vmem:[#allocation2 + $0x5d8] sm:$0xff]
    %v369 = vld [vmem:[#allocation2 + $0x5e0] sm:$0xff]
    %v370 = vld [vmem:[#allocation2 + $0x5e8] sm:$0xff]
    %v371 = vld [vmem:[#allocation2 + $0x5f0] sm:$0xff]
    %v372 = vld [vmem:[#allocation2 + $0x5f8] sm:$0xff]
    %v373 = vld [vmem:[#allocation2 + $0x600] sm:$0xff]
    %v374 = vld [vmem:[#allocation2 + $0x608] sm:$0xff]
    %v375 = vld [vmem:[#allocation2 + $0x610] sm:$0xff]
    %v376 = vld [vmem:[#allocation2 + $0x618] sm:$0xff]
    %v377 = vld [vmem:[#allocation2 + $0x620] sm:$0xff]
    %v378 = vld [vmem:[#allocation2 + $0x628] sm:$0xff]
    %v379 = vld [vmem:[#allocation2 + $0x630] sm:$0xff]
    %v380 = vld [vmem:[#allocation2 + $0x638] sm:$0xff]
    %v381 = vld [vmem:[#allocation2 + $0x640] sm:$0xff]
    %v382 = vld [vmem:[#allocation2 + $0x648] sm:$0xff]
    %v383 = vld [vmem:[#allocation2 + $0x650] sm:$0xff]
    %v384 = vld [vmem:[#allocation2 + $0x658] sm:$0xff]
    %v385 = vld [vmem:[#allocation2 + $0x660] sm:$0xff]
    %v386 = vld [vmem:[#allocation2 + $0x668] sm:$0xff]
    %v387 = vld [vmem:[#allocation2 + $0x670] sm:$0xff]
    %v388 = vld [vmem:[#allocation2 + $0x678] sm:$0xff]
    %v389 = vld [vmem:[#allocation2 + $0x680] sm:$0xff]
    %v390 = vld [vmem:[#allocation2 + $0x688] sm:$0xff]
    %v391 = vld [vmem:[#allocation2 + $0x690] sm:$0xff]
    %v392 = vld [vmem:[#allocation2 + $0x698] sm:$0xff]
    %v393 = vld [vmem:[#allocation2 + $0x6a0] sm:$0xff]
    %v394 = vld [vmem:[#allocation2 + $0x6a8] sm:$0xff]
    %v395 = vld [vmem:[#allocation2 + $0x6b0] sm:$0xff]
    %v396 = vld [vmem:[#allocation2 + $0x6b8] sm:$0xff]
    %v397 = vld [vmem:[#allocation2 + $0x6c0] sm:$0xff]
    %v398 = vld [vmem:[#allocation2 + $0x6c8] sm:$0xff]
    %v399 = vld [vmem:[#allocation2 + $0x6d0] sm:$0xff]
    %v400 = vld [vmem:[#allocation2 + $0x6d8] sm:$0xff]
    %v401 = vld [vmem:[#allocation2 + $0x6e0] sm:$0xff]
    %v402 = vld [vmem:[#allocation2 + $0x6e8] sm:$0xff]
    %v403 = vld [vmem:[#allocation2 + $0x6f0] sm:$0xff]
    %v404 = vld [vmem:[#allocation2 + $0x6f8] sm:$0xff]
    %v405 = vld [vmem:[#allocation2 + $0x700] sm:$0xff]
    %v406 = vld [vmem:[#allocation2 + $0x708] sm:$0xff]
    %v407 = vld [vmem:[#allocation2 + $0x710] sm:$0xff]
    %v408 = vld [vmem:[#allocation2 + $0x718] sm:$0xff]
    %v409 = vld [vmem:[#allocation2 + $0x720] sm:$0xff]
    %v410 = vld [vmem:[#allocation2 + $0x728] sm:$0xff]
    %v411 = vld [vmem:[#allocation2 + $0x730] sm:$0xff]
    %v412 = vld [vmem:[#allocation2 + $0x738] sm:$0xff]
    %v413 = vld [vmem:[#allocation2 + $0x740] sm:$0xff]
    %v414 = vld [vmem:[#allocation2 + $0x748] sm:$0xff]
    %v415 = vld [vmem:[#allocation2 + $0x750] sm:$0xff]
    %v416 = vld [vmem:[#allocation2 + $0x758] sm:$0xff]
    %v417 = vld [vmem:[#allocation2 + $0x760] sm:$0xff]
    %v418 = vld [vmem:[#allocation2 + $0x768] sm:$0xff]
    %v419 = vld [vmem:[#allocation2 + $0x770] sm:$0xff]
    %v420 = vld [vmem:[#allocation2 + $0x778] sm:$0xff]
    %v421 = vld [vmem:[#allocation2 + $0x780] sm:$0xff]
    %v422 = vld [vmem:[#allocation2 + $0x788] sm:$0xff]
    %v423 = vld [vmem:[#allocation2 + $0x790] sm:$0xff]
    %v424 = vld [vmem:[#allocation2 + $0x798] sm:$0xff]
    %v425 = vld [vmem:[#allocation2 + $0x7a0] sm:$0xff]
    %v426 = vld [vmem:[#allocation2 + $0x7a8] sm:$0xff]
    %v427 = vld [vmem:[#allocation2 + $0x7b0] sm:$0xff]
    %v428 = vld [vmem:[#allocation2 + $0x7b8] sm:$0xff]
    %v429 = vld [vmem:[#allocation2 + $0x7c0] sm:$0xff]
    %v430 = vld [vmem:[#allocation2 + $0x7c8] sm:$0xff]
    %v431 = vld [vmem:[#allocation2 + $0x7d0] sm:$0xff]
    %v432 = vld [vmem:[#allocation2 + $0x7d8] sm:$0xff]
    %v433 = vld [vmem:[#allocation2 + $0x7e0] sm:$0xff]
    %v434 = vld [vmem:[#allocation2 + $0x7e8] sm:$0xff]
    %v435 = vld [vmem:[#allocation2 + $0x7f0] sm:$0xff]
    %v436 = vld [vmem:[#allocation2 + $0x7f8] sm:$0xff]
    %v437 = vld [vmem:[%s4] sm:$0xf]
    %v439 = vperm.slane %v437, 0
    %v440 = vperm.slane %v437, 1
    %v441 = vperm.slane %v437, 2
    %v442 = vperm.slane %v437, 3
    %447 = vmatpush.msra.mxu0 %v241
    %448 = vmatpush.msra.mxu0 %v237
    %449 = vmatpush.msra.mxu0 %v233
    %450 = vmatpush.msra.mxu0 %v229
    %451 = vmatpush.msra.mxu0 %v225
    %452 = vmatpush.msra.mxu0 %v221
    %453 = vmatpush.msra.mxu0 %v217
    %454 = vmatpush.msra.mxu0 %v213
    %455 = vmatpush.msra.mxu0 %v209
    %456 = vmatpush.msra.mxu0 %v205
    %457 = vmatpush.msra.mxu0 %v201
    %458 = vmatpush.msra.mxu0 %v197
    %459 = vmatpush.msra.mxu0 %v193
    %460 = vmatpush.msra.mxu0 %v189
    %461 = vmatpush.msra.mxu0 %v185
    %462 = vmatpush.msra.mxu0 %v181
    %463 = vmatmul.f32.gmra.mxu0 %v177
    %v464 = vpop.f32.mrf.mxu0
    %v465 = vadd.f32 %v439, %v464
    %466 = vdwg.mxu0
    %467 = vmatpush.msra.mxu0 %v305
    %468 = vmatpush.msra.mxu0 %v301
    %469 = vmatpush.msra.mxu0 %v297
    %470 = vmatpush.msra.mxu0 %v293
    %471 = vmatpush.msra.mxu0 %v289
    %472 = vmatpush.msra.mxu0 %v285
    %473 = vmatpush.msra.mxu0 %v281
    %474 = vmatpush.msra.mxu0 %v277
    %475 = vmatpush.msra.mxu0 %v273
    %476 = vmatpush.msra.mxu0 %v269
    %477 = vmatpush.msra.mxu0 %v265
    %478 = vmatpush.msra.mxu0 %v261
    %479 = vmatpush.msra.mxu0 %v257
    %480 = vmatpush.msra.mxu0 %v253
    %481 = vmatpush.msra.mxu0 %v249
    %482 = vmatpush.msra.mxu0 %v245
    %483 = vmatmul.f32.gmra.mxu0 %v178
    %v484 = vpop.f32.mrf.mxu0
    %v485 = vadd.f32 %v465, %v484
    %486 = vdwg.mxu0
    %487 = vmatpush.msra.mxu0 %v369
    %488 = vmatpush.msra.mxu0 %v365
    %489 = vmatpush.msra.mxu0 %v361
    %490 = vmatpush.msra.mxu0 %v357
    %491 = vmatpush.msra.mxu0 %v353
    %492 = vmatpush.msra.mxu0 %v349
    %493 = vmatpush.msra.mxu0 %v345
    %494 = vmatpush.msra.mxu0 %v341
    %495 = vmatpush.msra.mxu0 %v337
    %496 = vmatpush.msra.mxu0 %v333
    %497 = vmatpush.msra.mxu0 %v329
    %498 = vmatpush.msra.mxu0 %v325
    %499 = vmatpush.msra.mxu0 %v321
    %500 = vmatpush.msra.mxu0 %v317
    %501 = vmatpush.msra.mxu0 %v313
    %502 = vmatpush.msra.mxu0 %v309
    %503 = vmatmul.f32.gmra.mxu0 %v179
    %v504 = vpop.f32.mrf.mxu0
    %v505 = vadd.f32 %v485, %v504
    %506 = vdwg.mxu0
    %507 = vmatpush.msra.mxu0 %v433
    %508 = vmatpush.msra.mxu0 %v429
    %509 = vmatpush.msra.mxu0 %v425
    %510 = vmatpush.msra.mxu0 %v421
    %511 = vmatpush.msra.mxu0 %v417
    %512 = vmatpush.msra.mxu0 %v413
    %513 = vmatpush.msra.mxu0 %v409
    %514 = vmatpush.msra.mxu0 %v405
    %515 = vmatpush.msra.mxu0 %v401
    %516 = vmatpush.msra.mxu0 %v397
    %517 = vmatpush.msra.mxu0 %v393
    %518 = vmatpush.msra.mxu0 %v389
    %519 = vmatpush.msra.mxu0 %v385
    %520 = vmatpush.msra.mxu0 %v381
    %521 = vmatpush.msra.mxu0 %v377
    %522 = vmatpush.msra.mxu0 %v373
    %523 = vmatmul.f32.gmra.mxu0 %v180
    %v524 = vpop.f32.mrf.mxu0
    %v525 = vadd.f32 %v505, %v524
    %526 = vdwg.mxu0
    %527 = vmatpush.msra.mxu0 %v242
    %528 = vmatpush.msra.mxu0 %v238
    %529 = vmatpush.msra.mxu0 %v234
    %530 = vmatpush.msra.mxu0 %v230
    %531 = vmatpush.msra.mxu0 %v226
    %532 = vmatpush.msra.mxu0 %v222
    %533 = vmatpush.msra.mxu0 %v218
    %534 = vmatpush.msra.mxu0 %v214
    %535 = vmatpush.msra.mxu0 %v210
    %536 = vmatpush.msra.mxu0 %v206
    %537 = vmatpush.msra.mxu0 %v202
    %538 = vmatpush.msra.mxu0 %v198
    %539 = vmatpush.msra.mxu0 %v194
    %540 = vmatpush.msra.mxu0 %v190
    %541 = vmatpush.msra.mxu0 %v186
    %542 = vmatpush.msra.mxu0 %v182
    %543 = vmatmul.f32.gmra.mxu0 %v177
    %v544 = vpop.f32.mrf.mxu0
    %v545 = vadd.f32 %v440, %v544
    %546 = vdwg.mxu0
    %547 = vmatpush.msra.mxu0 %v306
    %548 = vmatpush.msra.mxu0 %v302
    %549 = vmatpush.msra.mxu0 %v298
    %550 = vmatpush.msra.mxu0 %v294
    %551 = vmatpush.msra.mxu0 %v290
    %552 = vmatpush.msra.mxu0 %v286
    %553 = vmatpush.msra.mxu0 %v282
    %554 = vmatpush.msra.mxu0 %v278
    %555 = vmatpush.msra.mxu0 %v274
    %556 = vmatpush.msra.mxu0 %v270
    %557 = vmatpush.msra.mxu0 %v266
    %558 = vmatpush.msra.mxu0 %v262
    %559 = vmatpush.msra.mxu0 %v258
    %560 = vmatpush.msra.mxu0 %v254
    %561 = vmatpush.msra.mxu0 %v250
    %562 = vmatpush.msra.mxu0 %v246
    %563 = vmatmul.f32.gmra.mxu0 %v178
    %v564 = vpop.f32.mrf.mxu0
    %v565 = vadd.f32 %v545, %v564
    %566 = vdwg.mxu0
    %567 = vmatpush.msra.mxu0 %v370
    %568 = vmatpush.msra.mxu0 %v366
    %569 = vmatpush.msra.mxu0 %v362
    %570 = vmatpush.msra.mxu0 %v358
    %571 = vmatpush.msra.mxu0 %v354
    %572 = vmatpush.msra.mxu0 %v350
    %573 = vmatpush.msra.mxu0 %v346
    %574 = vmatpush.msra.mxu0 %v342
    %575 = vmatpush.msra.mxu0 %v338
    %576 = vmatpush.msra.mxu0 %v334
    %577 = vmatpush.msra.mxu0 %v330
    %578 = vmatpush.msra.mxu0 %v326
    %579 = vmatpush.msra.mxu0 %v322
    %580 = vmatpush.msra.mxu0 %v318
    %581 = vmatpush.msra.mxu0 %v314
    %582 = vmatpush.msra.mxu0 %v310
    %583 = vmatmul.f32.gmra.mxu0 %v179
    %v584 = vpop.f32.mrf.mxu0
    %v585 = vadd.f32 %v565, %v584
    %586 = vdwg.mxu0
    %587 = vmatpush.msra.mxu0 %v434
    %588 = vmatpush.msra.mxu0 %v430
    %589 = vmatpush.msra.mxu0 %v426
    %590 = vmatpush.msra.mxu0 %v422
    %591 = vmatpush.msra.mxu0 %v418
    %592 = vmatpush.msra.mxu0 %v414
    %593 = vmatpush.msra.mxu0 %v410
    %594 = vmatpush.msra.mxu0 %v406
    %595 = vmatpush.msra.mxu0 %v402
    %596 = vmatpush.msra.mxu0 %v398
    %597 = vmatpush.msra.mxu0 %v394
    %598 = vmatpush.msra.mxu0 %v390
    %599 = vmatpush.msra.mxu0 %v386
    %600 = vmatpush.msra.mxu0 %v382
    %601 = vmatpush.msra.mxu0 %v378
    %602 = vmatpush.msra.mxu0 %v374
    %603 = vmatmul.f32.gmra.mxu0 %v180
    %v604 = vpop.f32.mrf.mxu0
    %v605 = vadd.f32 %v585, %v604
    %606 = vdwg.mxu0
    %607 = vmatpush.msra.mxu0 %v243
    %608 = vmatpush.msra.mxu0 %v239
    %609 = vmatpush.msra.mxu0 %v235
    %610 = vmatpush.msra.mxu0 %v231
    %611 = vmatpush.msra.mxu0 %v227
    %612 = vmatpush.msra.mxu0 %v223
    %613 = vmatpush.msra.mxu0 %v219
    %614 = vmatpush.msra.mxu0 %v215
    %615 = vmatpush.msra.mxu0 %v211
    %616 = vmatpush.msra.mxu0 %v207
    %617 = vmatpush.msra.mxu0 %v203
    %618 = vmatpush.msra.mxu0 %v199
    %619 = vmatpush.msra.mxu0 %v195
    %620 = vmatpush.msra.mxu0 %v191
    %621 = vmatpush.msra.mxu0 %v187
    %622 = vmatpush.msra.mxu0 %v183
    %623 = vmatmul.f32.gmra.mxu0 %v177
    %v624 = vpop.f32.mrf.mxu0
    %v625 = vadd.f32 %v441, %v624
    %626 = vdwg.mxu0
    %627 = vmatpush.msra.mxu0 %v307
    %628 = vmatpush.msra.mxu0 %v303
    %629 = vmatpush.msra.mxu0 %v299
    %630 = vmatpush.msra.mxu0 %v295
    %631 = vmatpush.msra.mxu0 %v291
    %632 = vmatpush.msra.mxu0 %v287
    %633 = vmatpush.msra.mxu0 %v283
    %634 = vmatpush.msra.mxu0 %v279
    %635 = vmatpush.msra.mxu0 %v275
    %636 = vmatpush.msra.mxu0 %v271
    %637 = vmatpush.msra.mxu0 %v267
    %638 = vmatpush.msra.mxu0 %v263
    %639 = vmatpush.msra.mxu0 %v259
    %640 = vmatpush.msra.mxu0 %v255
    %641 = vmatpush.msra.mxu0 %v251
    %642 = vmatpush.msra.mxu0 %v247
    %643 = vmatmul.f32.gmra.mxu0 %v178
    %v644 = vpop.f32.mrf.mxu0
    %v645 = vadd.f32 %v625, %v644
    %646 = vdwg.mxu0
    %647 = vmatpush.msra.mxu0 %v371
    %648 = vmatpush.msra.mxu0 %v367
    %649 = vmatpush.msra.mxu0 %v363
    %650 = vmatpush.msra.mxu0 %v359
    %651 = vmatpush.msra.mxu0 %v355
    %652 = vmatpush.msra.mxu0 %v351
    %653 = vmatpush.msra.mxu0 %v347
    %654 = vmatpush.msra.mxu0 %v343
    %655 = vmatpush.msra.mxu0 %v339
    %656 = vmatpush.msra.mxu0 %v335
    %657 = vmatpush.msra.mxu0 %v331
    %658 = vmatpush.msra.mxu0 %v327
    %659 = vmatpush.msra.mxu0 %v323
    %660 = vmatpush.msra.mxu0 %v319
    %661 = vmatpush.msra.mxu0 %v315
    %662 = vmatpush.msra.mxu0 %v311
    %663 = vmatmul.f32.gmra.mxu0 %v179
    %v664 = vpop.f32.mrf.mxu0
    %v665 = vadd.f32 %v645, %v664
    %666 = vdwg.mxu0
    %667 = vmatpush.msra.mxu0 %v435
    %668 = vmatpush.msra.mxu0 %v431
    %669 = vmatpush.msra.mxu0 %v427
    %670 = vmatpush.msra.mxu0 %v423
    %671 = vmatpush.msra.mxu0 %v419
    %672 = vmatpush.msra.mxu0 %v415
    %673 = vmatpush.msra.mxu0 %v411
    %674 = vmatpush.msra.mxu0 %v407
    %675 = vmatpush.msra.mxu0 %v403
    %676 = vmatpush.msra.mxu0 %v399
    %677 = vmatpush.msra.mxu0 %v395
    %678 = vmatpush.msra.mxu0 %v391
    %679 = vmatpush.msra.mxu0 %v387
    %680 = vmatpush.msra.mxu0 %v383
    %681 = vmatpush.msra.mxu0 %v379
    %682 = vmatpush.msra.mxu0 %v375
    %683 = vmatmul.f32.gmra.mxu0 %v180
    %v684 = vpop.f32.mrf.mxu0
    %v685 = vadd.f32 %v665, %v684
    %686 = vdwg.mxu0
    %687 = vmatpush.msra.mxu0 %v244
    %688 = vmatpush.msra.mxu0 %v240
    %689 = vmatpush.msra.mxu0 %v236
    %690 = vmatpush.msra.mxu0 %v232
    %691 = vmatpush.msra.mxu0 %v228
    %692 = vmatpush.msra.mxu0 %v224
    %693 = vmatpush.msra.mxu0 %v220
    %694 = vmatpush.msra.mxu0 %v216
    %695 = vmatpush.msra.mxu0 %v212
    %696 = vmatpush.msra.mxu0 %v208
    %697 = vmatpush.msra.mxu0 %v204
    %698 = vmatpush.msra.mxu0 %v200
    %699 = vmatpush.msra.mxu0 %v196
    %700 = vmatpush.msra.mxu0 %v192
    %701 = vmatpush.msra.mxu0 %v188
    %702 = vmatpush.msra.mxu0 %v184
    %703 = vmatmul.f32.gmra.mxu0 %v177
    %v704 = vpop.f32.mrf.mxu0
    %v705 = vadd.f32 %v442, %v704
    %706 = vdwg.mxu0
    %707 = vmatpush.msra.mxu0 %v308
    %708 = vmatpush.msra.mxu0 %v304
    %709 = vmatpush.msra.mxu0 %v300
    %710 = vmatpush.msra.mxu0 %v296
    %711 = vmatpush.msra.mxu0 %v292
    %712 = vmatpush.msra.mxu0 %v288
    %713 = vmatpush.msra.mxu0 %v284
    %714 = vmatpush.msra.mxu0 %v280
    %715 = vmatpush.msra.mxu0 %v276
    %716 = vmatpush.msra.mxu0 %v272
    %717 = vmatpush.msra.mxu0 %v268
    %718 = vmatpush.msra.mxu0 %v264
    %719 = vmatpush.msra.mxu0 %v260
    %720 = vmatpush.msra.mxu0 %v256
    %721 = vmatpush.msra.mxu0 %v252
    %722 = vmatpush.msra.mxu0 %v248
    %723 = vmatmul.f32.gmra.mxu0 %v178
    %v724 = vpop.f32.mrf.mxu0
    %v725 = vadd.f32 %v705, %v724
    %726 = vdwg.mxu0
    %727 = vmatpush.msra.mxu0 %v372
    %728 = vmatpush.msra.mxu0 %v368
    %729 = vmatpush.msra.mxu0 %v364
    %730 = vmatpush.msra.mxu0 %v360
    %731 = vmatpush.msra.mxu0 %v356
    %732 = vmatpush.msra.mxu0 %v352
    %733 = vmatpush.msra.mxu0 %v348
    %734 = vmatpush.msra.mxu0 %v344
    %735 = vmatpush.msra.mxu0 %v340
    %736 = vmatpush.msra.mxu0 %v336
    %737 = vmatpush.msra.mxu0 %v332
    %738 = vmatpush.msra.mxu0 %v328
    %739 = vmatpush.msra.mxu0 %v324
    %740 = vmatpush.msra.mxu0 %v320
    %741 = vmatpush.msra.mxu0 %v316
    %742 = vmatpush.msra.mxu0 %v312
    %743 = vmatmul.f32.gmra.mxu0 %v179
    %v744 = vpop.f32.mrf.mxu0
    %v745 = vadd.f32 %v725, %v744
    %746 = vdwg.mxu0
    %747 = vmatpush.msra.mxu0 %v436
    %748 = vmatpush.msra.mxu0 %v432
    %749 = vmatpush.msra.mxu0 %v428
    %750 = vmatpush.msra.mxu0 %v424
    %751 = vmatpush.msra.mxu0 %v420
    %752 = vmatpush.msra.mxu0 %v416
    %753 = vmatpush.msra.mxu0 %v412
    %754 = vmatpush.msra.mxu0 %v408
    %755 = vmatpush.msra.mxu0 %v404
    %756 = vmatpush.msra.mxu0 %v400
    %757 = vmatpush.msra.mxu0 %v396
    %758 = vmatpush.msra.mxu0 %v392
    %759 = vmatpush.msra.mxu0 %v388
    %760 = vmatpush.msra.mxu0 %v384
    %761 = vmatpush.msra.mxu0 %v380
    %762 = vmatpush.msra.mxu0 %v376
    %763 = vmatmul.f32.gmra.mxu0 %v180
    %v764 = vpop.f32.mrf.mxu0
    %v765 = vadd.f32 %v745, %v764
    %766 = vdwg.mxu0
    %v767 = vmax.f32 %v525, 0.0
    %v768 = vmax.f32 %v605, 0.0
    %v769 = vmax.f32 %v685, 0.0
    %v770 = vmax.f32 %v765, 0.0
    %v771 = vld [vmem:[%s5] sm:$0xff]
    %v772 = vld [vmem:[%s5 + $0x8] sm:$0xff]
    %v773 = vld [vmem:[%s5 + $0x10] sm:$0xff]
    %v774 = vld [vmem:[%s5 + $0x18] sm:$0xff]
    %v775 = vld [vmem:[%s5 + $0x20] sm:$0xff]
    %v776 = vld [vmem:[%s5 + $0x28] sm:$0xff]
    %v777 = vld [vmem:[%s5 + $0x30] sm:$0xff]
    %v778 = vld [vmem:[%s5 + $0x38] sm:$0xff]
    %v779 = vld [vmem:[%s5 + $0x40] sm:$0xff]
    %v780 = vld [vmem:[%s5 + $0x48] sm:$0xff]
    %v781 = vld [vmem:[%s5 + $0x50] sm:$0xff]
    %v782 = vld [vmem:[%s5 + $0x58] sm:$0xff]
    %v783 = vld [vmem:[%s5 + $0x60] sm:$0xff]
    %v784 = vld [vmem:[%s5 + $0x68] sm:$0xff]
    %v785 = vld [vmem:[%s5 + $0x70] sm:$0xff]
    %v786 = vld [vmem:[%s5 + $0x78] sm:$0xff]
    %v787 = vld [vmem:[%s5 + $0x80] sm:$0xff]
    %v788 = vld [vmem:[%s5 + $0x88] sm:$0xff]
    %v789 = vld [vmem:[%s5 + $0x90] sm:$0xff]
    %v790 = vld [vmem:[%s5 + $0x98] sm:$0xff]
    %v791 = vld [vmem:[%s5 + $0xa0] sm:$0xff]
    %v792 = vld [vmem:[%s5 + $0xa8] sm:$0xff]
    %v793 = vld [vmem:[%s5 + $0xb0] sm:$0xff]
    %v794 = vld [vmem:[%s5 + $0xb8] sm:$0xff]
    %v795 = vld [vmem:[%s5 + $0xc0] sm:$0xff]
    %v796 = vld [vmem:[%s5 + $0xc8] sm:$0xff]
    %v797 = vld [vmem:[%s5 + $0xd0] sm:$0xff]
    %v798 = vld [vmem:[%s5 + $0xd8] sm:$0xff]
    %v799 = vld [vmem:[%s5 + $0xe0] sm:$0xff]
    %v800 = vld [vmem:[%s5 + $0xe8] sm:$0xff]
    %v801 = vld [vmem:[%s5 + $0xf0] sm:$0xff]
    %v802 = vld [vmem:[%s5 + $0xf8] sm:$0xff]
    %v803 = vld [vmem:[%s5 + $0x100] sm:$0xff]
    %v804 = vld [vmem:[%s5 + $0x108] sm:$0xff]
    %v805 = vld [vmem:[%s5 + $0x110] sm:$0xff]
    %v806 = vld [vmem:[%s5 + $0x118] sm:$0xff]
    %v807 = vld [vmem:[%s5 + $0x120] sm:$0xff]
    %v808 = vld [vmem:[%s5 + $0x128] sm:$0xff]
    %v809 = vld [vmem:[%s5 + $0x130] sm:$0xff]
    %v810 = vld [vmem:[%s5 + $0x138] sm:$0xff]
    %v811 = vld [vmem:[%s5 + $0x140] sm:$0xff]
    %v812 = vld [vmem:[%s5 + $0x148] sm:$0xff]
    %v813 = vld [vmem:[%s5 + $0x150] sm:$0xff]
    %v814 = vld [vmem:[%s5 + $0x158] sm:$0xff]
    %v815 = vld [vmem:[%s5 + $0x160] sm:$0xff]
    %v816 = vld [vmem:[%s5 + $0x168] sm:$0xff]
    %v817 = vld [vmem:[%s5 + $0x170] sm:$0xff]
    %v818 = vld [vmem:[%s5 + $0x178] sm:$0xff]
    %v819 = vld [vmem:[%s5 + $0x180] sm:$0xff]
    %v820 = vld [vmem:[%s5 + $0x188] sm:$0xff]
    %v821 = vld [vmem:[%s5 + $0x190] sm:$0xff]
    %v822 = vld [vmem:[%s5 + $0x198] sm:$0xff]
    %v823 = vld [vmem:[%s5 + $0x1a0] sm:$0xff]
    %v824 = vld [vmem:[%s5 + $0x1a8] sm:$0xff]
    %v825 = vld [vmem:[%s5 + $0x1b0] sm:$0xff]
    %v826 = vld [vmem:[%s5 + $0x1b8] sm:$0xff]
    %v827 = vld [vmem:[%s5 + $0x1c0] sm:$0xff]
    %v828 = vld [vmem:[%s5 + $0x1c8] sm:$0xff]
    %v829 = vld [vmem:[%s5 + $0x1d0] sm:$0xff]
    %v830 = vld [vmem:[%s5 + $0x1d8] sm:$0xff]
    %v831 = vld [vmem:[%s5 + $0x1e0] sm:$0xff]
    %v832 = vld [vmem:[%s5 + $0x1e8] sm:$0xff]
    %v833 = vld [vmem:[%s5 + $0x1f0] sm:$0xff]
    %v834 = vld [vmem:[%s5 + $0x1f8] sm:$0xff]
    %v835 = vld [vmem:[%s6] sm:$0x1]
    %v837 = vperm.slane %v835, 0
    %839 = vmatpush.msra.mxu0 %v786
    %840 = vmatpush.msra.mxu0 %v785
    %841 = vmatpush.msra.mxu0 %v784
    %842 = vmatpush.msra.mxu0 %v783
    %843 = vmatpush.msra.mxu0 %v782
    %844 = vmatpush.msra.mxu0 %v781
    %845 = vmatpush.msra.mxu0 %v780
    %846 = vmatpush.msra.mxu0 %v779
    %847 = vmatpush.msra.mxu0 %v778
    %848 = vmatpush.msra.mxu0 %v777
    %849 = vmatpush.msra.mxu0 %v776
    %850 = vmatpush.msra.mxu0 %v775
    %851 = vmatpush.msra.mxu0 %v774
    %852 = vmatpush.msra.mxu0 %v773
    %853 = vmatpush.msra.mxu0 %v772
    %854 = vmatpush.msra.mxu0 %v771
    %855 = vmatmul.f32.gmra.mxu0 %v767
    %v856 = vpop.f32.mrf.mxu0
    %v857 = vadd.f32 %v837, %v856
    %858 = vdwg.mxu0
    %859 = vmatpush.msra.mxu0 %v802
    %860 = vmatpush.msra.mxu0 %v801
    %861 = vmatpush.msra.mxu0 %v800
    %862 = vmatpush.msra.mxu0 %v799
    %863 = vmatpush.msra.mxu0 %v798
    %864 = vmatpush.msra.mxu0 %v797
    %865 = vmatpush.msra.mxu0 %v796
    %866 = vmatpush.msra.mxu0 %v795
    %867 = vmatpush.msra.mxu0 %v794
    %868 = vmatpush.msra.mxu0 %v793
    %869 = vmatpush.msra.mxu0 %v792
    %870 = vmatpush.msra.mxu0 %v791
    %871 = vmatpush.msra.mxu0 %v790
    %872 = vmatpush.msra.mxu0 %v789
    %873 = vmatpush.msra.mxu0 %v788
    %874 = vmatpush.msra.mxu0 %v787
    %875 = vmatmul.f32.gmra.mxu0 %v768
    %v876 = vpop.f32.mrf.mxu0
    %v877 = vadd.f32 %v857, %v876
    %878 = vdwg.mxu0
    %879 = vmatpush.msra.mxu0 %v818
    %880 = vmatpush.msra.mxu0 %v817
    %881 = vmatpush.msra.mxu0 %v816
    %882 = vmatpush.msra.mxu0 %v815
    %883 = vmatpush.msra.mxu0 %v814
    %884 = vmatpush.msra.mxu0 %v813
    %885 = vmatpush.msra.mxu0 %v812
    %886 = vmatpush.msra.mxu0 %v811
    %887 = vmatpush.msra.mxu0 %v810
    %888 = vmatpush.msra.mxu0 %v809
    %889 = vmatpush.msra.mxu0 %v808
    %890 = vmatpush.msra.mxu0 %v807
    %891 = vmatpush.msra.mxu0 %v806
    %892 = vmatpush.msra.mxu0 %v805
    %893 = vmatpush.msra.mxu0 %v804
    %894 = vmatpush.msra.mxu0 %v803
    %895 = vmatmul.f32.gmra.mxu0 %v769
    %v896 = vpop.f32.mrf.mxu0
    %v897 = vadd.f32 %v877, %v896
    %898 = vdwg.mxu0
    %899 = vmatpush.msra.mxu0 %v834
    %900 = vmatpush.msra.mxu0 %v833
    %901 = vmatpush.msra.mxu0 %v832
    %902 = vmatpush.msra.mxu0 %v831
    %903 = vmatpush.msra.mxu0 %v830
    %904 = vmatpush.msra.mxu0 %v829
    %905 = vmatpush.msra.mxu0 %v828
    %906 = vmatpush.msra.mxu0 %v827
    %907 = vmatpush.msra.mxu0 %v826
    %908 = vmatpush.msra.mxu0 %v825
    %909 = vmatpush.msra.mxu0 %v824
    %910 = vmatpush.msra.mxu0 %v823
    %911 = vmatpush.msra.mxu0 %v822
    %912 = vmatpush.msra.mxu0 %v821
    %913 = vmatpush.msra.mxu0 %v820
    %914 = vmatpush.msra.mxu0 %v819
    %915 = vmatmul.f32.gmra.mxu0 %v770
    %v916 = vpop.f32.mrf.mxu0
    %v917 = vadd.f32 %v897, %v916
    %918 = vdwg.mxu0
    %vm919 = vcmask 31744
    %920 = vst.msk [vmem:[%s7] sm:$0xff] %vm919, %v917
    // Predicated region
    $region34: #{tpu_custom_call.1} parent=1 // pred_check
      _
    $region35: #{tpu_custom_call.1} parent=1 // pred_check_branch
      %922 = sbr.rel (0) target = $region37
    $region36: #{tpu_custom_call.1} parent=1 // pred_region
      _
    $region37: #{tpu_custom_call.1} parent=1 // pred_fallthru
      _
    // Predicated region
    $region38: #{tpu_custom_call.1} parent=1 // pred_check
      _
    $region39: #{tpu_custom_call.1} parent=1 // pred_check_branch
      %924 = sbr.rel (0) target = $region41
    $region40: #{tpu_custom_call.1} parent=1 // pred_region
      _
    $region41: #{tpu_custom_call.1} parent=1 // pred_fallthru
      _
    %925 = vsyncpa [#allocation3], 1

</llo_original>
